<compile_context>
chip_gen: v5e
topology: v5e:2x2
jax: 0.10.0
libtpu: 0.0.40
codegen_flags: <defaults>
</compile_context>

<pallas_src>
import functools

import numpy as np
import jax
import jax.numpy as jnp
from jax.experimental import pallas as pl
from jax.experimental.pallas import tpu as pltpu

BN_EPS = 1e-5
LANE = 128
MAX_BM = 512          # row-tile target (keeps double-buffered working set small)


def _round_up(x, m):
    return (x + m - 1) // m * m


def _row_tile(m):
    return min(MAX_BM, _round_up(m, 8))


def _pad_rows(a, bm):
    m = a.shape[0]
    mp = _round_up(m, bm)
    if mp != m:
        a = jnp.pad(a, ((0, mp - m), (0, 0)))
    return a


def _compiler_params(n_axes):
    return pltpu.CompilerParams(
        dimension_semantics=("parallel",) * n_axes,
        vmem_limit_bytes=64 * 1024 * 1024,
    )


# ------------------------------ Pallas kernels ------------------------------

def upsample2x_kernel(x_ref, awt_ref, ah_ref, o_ref):
    """Fused bilinear 2x upsample (align_corners=True) for one (image, C-tile)."""
    bc, h, w = x_ref.shape[1], x_ref.shape[2], x_ref.shape[3]
    ow = awt_ref.shape[1]
    oh = ah_ref.shape[0]
    x = x_ref[0].reshape(bc * h, w)
    # width pass: contract over W
    t = jnp.dot(x, awt_ref[...], preferred_element_type=jnp.float32)    # (bc*h, ow)
    t = t.reshape(bc, h, ow)
    # height pass: batched matmul over the channel tile (contract over H)
    ah_b = jnp.broadcast_to(ah_ref[...], (bc, oh, h))
    u = jnp.einsum('coh,chv->cov', ah_b, t,
                   preferred_element_type=jnp.float32)                   # (bc, oh, ow)
    o_ref[0] = u


def matmul_bias_kernel(a_ref, b_ref, bias_ref, o_ref):
    o_ref[...] = (jnp.dot(a_ref[...], b_ref[...],
                          preferred_element_type=jnp.float32) + bias_ref[...])


def matmul_bias_stats_kernel(a_ref, b_ref, bias_ref, y_ref, stats_ref, *, bm, m_real):
    """Conv matmul + bias; also emits masked per-tile (sum, sum_sq) BN partials."""
    y = (jnp.dot(a_ref[...], b_ref[...],
                 preferred_element_type=jnp.float32) + bias_ref[...])
    y_ref[...] = y
    cp = y.shape[1]
    row = pl.program_id(0) * bm + jax.lax.broadcasted_iota(jnp.int32, (bm, cp), 0)
    ym = jnp.where(row < m_real, y, 0.0)                 # padded rows excluded
    stats = jnp.concatenate(
        [jnp.sum(ym, axis=0, keepdims=True),
         jnp.sum(ym * ym, axis=0, keepdims=True)], axis=0)               # (2, cp)
    stats_ref[...] = stats[None]


def bn_relu_kernel(y_ref, scale_ref, shift_ref, o_ref):
    y = y_ref[...] * scale_ref[...] + shift_ref[...]
    o_ref[...] = jnp.maximum(y, 0.0).astype(o_ref.dtype)


# ------------------------------ pallas_call wrappers ------------------------------

def bilinear_matrix(n_in, n_out):
    """(n_out, n_in) interpolation matrix, torch Upsample(bilinear, align_corners=True)."""
    a = np.zeros((n_out, n_in), dtype=np.float32)
    if n_in == 1:
        a[:, 0] = 1.0
        return jnp.asarray(a)
    s = np.arange(n_out) * (n_in - 1) / (n_out - 1)
    i0 = np.floor(s).astype(np.int64)
    i1 = np.minimum(i0 + 1, n_in - 1)
    frac = (s - i0).astype(np.float32)
    a[np.arange(n_out), i0] += 1.0 - frac
    a[np.arange(n_out), i1] += frac
    return jnp.asarray(a)


def pallas_upsample2x(x_nchw):
    """NCHW -> NCHW 2x bilinear upsample, single fused kernel."""
    n, c, h, w = x_nchw.shape
    oh, ow = 2 * h, 2 * w
    awt = bilinear_matrix(w, ow).T           # (W, OW)
    ah = bilinear_matrix(h, oh)              # (OH, H)
    bc = 128 if (c > 128 and c % 128 == 0) else c
    return pl.pallas_call(
        upsample2x_kernel,
        out_shape=jax.ShapeDtypeStruct((n, c, oh, ow), jnp.float32),
        grid=(n, c // bc),
        in_specs=[
            pl.BlockSpec((1, bc, h, w), lambda i, j: (i, j, 0, 0)),
            pl.BlockSpec((w, ow), lambda i, j: (0, 0)),     # resident
            pl.BlockSpec((oh, h), lambda i, j: (0, 0)),     # resident
        ],
        out_specs=pl.BlockSpec((1, bc, oh, ow), lambda i, j: (i, j, 0, 0)),
        compiler_params=_compiler_params(2),
    )(x_nchw, awt, ah)


def pallas_matmul_bias(a, b, bias):
    """Tiled A(bf16) @ B(bf16, resident) + bias, f32 out."""
    m, kp = a.shape
    cp = b.shape[1]
    bm = _row_tile(m)
    a = _pad_rows(a, bm)
    mp = a.shape[0]
    return pl.pallas_call(
        matmul_bias_kernel,
        out_shape=jax.ShapeDtypeStruct((mp, cp), jnp.float32),
        grid=(mp // bm,),
        in_specs=[
            pl.BlockSpec((bm, kp), lambda i: (i, 0)),
            pl.BlockSpec((kp, cp), lambda i: (0, 0)),       # weights resident
            pl.BlockSpec((1, cp), lambda i: (0, 0)),        # bias resident
        ],
        out_specs=pl.BlockSpec((bm, cp), lambda i: (i, 0)),
        compiler_params=_compiler_params(1),
    )(a, b, bias)


def pallas_conv_bn_relu(a, b, bias, gamma, beta, m_real, out_dtype):
    """Tiled conv matmul -> batch-stat BatchNorm -> ReLU (two Pallas passes)."""
    m, kp = a.shape
    cp = b.shape[1]
    bm = _row_tile(m)
    a = _pad_rows(a, bm)
    mp = a.shape[0]
    nblk = mp // bm

    kernel = functools.partial(matmul_bias_stats_kernel, bm=bm, m_real=m_real)
    y, stats = pl.pallas_call(
        kernel,
        out_shape=(jax.ShapeDtypeStruct((mp, cp), jnp.float32),
                   jax.ShapeDtypeStruct((nblk, 2, cp), jnp.float32)),
        grid=(nblk,),
        in_specs=[
            pl.BlockSpec((bm, kp), lambda i: (i, 0)),
            pl.BlockSpec((kp, cp), lambda i: (0, 0)),
            pl.BlockSpec((1, cp), lambda i: (0, 0)),
        ],
        out_specs=(pl.BlockSpec((bm, cp), lambda i: (i, 0)),
                   pl.BlockSpec((1, 2, cp), lambda i: (i, 0, 0))),
        compiler_params=_compiler_params(1),
    )(a, b, bias)

    # tiny cross-tile stats reduction (a few KiB) in plain JAX
    s1 = jnp.sum(stats[:, 0, :], axis=0)
    s2 = jnp.sum(stats[:, 1, :], axis=0)
    mean = s1 / m_real
    var = s2 / m_real - mean * mean
    scale = (gamma * jax.lax.rsqrt(var + BN_EPS)).astype(jnp.float32)    # (1, cp)
    shift = (beta - mean * scale).astype(jnp.float32)                    # (1, cp)

    return pl.pallas_call(
        bn_relu_kernel,
        out_shape=jax.ShapeDtypeStruct((mp, cp), out_dtype),
        grid=(nblk,),
        in_specs=[
            pl.BlockSpec((bm, cp), lambda i: (i, 0)),
            pl.BlockSpec((1, cp), lambda i: (0, 0)),
            pl.BlockSpec((1, cp), lambda i: (0, 0)),
        ],
        out_specs=pl.BlockSpec((bm, cp), lambda i: (i, 0)),
        compiler_params=_compiler_params(1),
    )(y, scale, shift)


# ------------------------------ glue (plain JAX / numpy) ------------------------------

def im2col_bf16(x_nhwc, kh, kw, kp):
    # TODO(synk): extract patches inside the matmul kernel (shifted windows over a
    # resident NHWC block) to avoid materializing the kh*kw-expanded matrix in HBM.
    n, h, w, c = x_nhwc.shape
    ho, wo = h - kh + 1, w - kw + 1
    cols = [x_nhwc[:, i:i + ho, j:j + wo, :] for i in range(kh) for j in range(kw)]
    p = jnp.concatenate(cols, axis=-1).astype(jnp.bfloat16)
    a = p.reshape(n * ho * wo, kh * kw * c)
    a = jnp.pad(a, ((0, 0), (0, kp - kh * kw * c)))
    return a, (n, ho, wo)


def pack_weight(w_oihw, kp, cp):
    co, ci, kh, kw = w_oihw.shape
    m = jnp.transpose(w_oihw, (2, 3, 1, 0)).reshape(kh * kw * ci, co)
    m = jnp.pad(m, ((0, kp - kh * kw * ci), (0, cp - co)))
    return m.astype(jnp.bfloat16)


def pack_vec(v, cp):                       # v: (1, Ch) -> (1, Cp) f32
    return jnp.pad(v, ((0, 0), (0, cp - v.shape[1]))).astype(jnp.float32)


def crop_nhwc(skip_nhwc, ho, wo):
    """Matches the reference crop() exactly (floor rounding on both ends)."""
    _, hs, ws, _ = skip_nhwc.shape
    h0, h1 = int((hs - ho) / 2), int((hs + ho) / 2)
    w0, w1 = int((ws - wo) / 2), int((ws + wo) / 2)
    return skip_nhwc[:, h0:h1, w0:w1, :]


# ------------------------------ ExpandingBlock forward ------------------------------

def expanding_block_forward(x_nchw, skip_nchw, params):
    n, c, h, w = x_nchw.shape
    ch = c // 2
    cp = _round_up(ch, LANE)

    gamma = pack_vec(params['gamma'], cp)
    beta = pack_vec(params['beta'], cp)

    # upsample(scale=2, bilinear, align_corners=True), then one NCHW->NHWC switch
    up = pallas_upsample2x(x_nchw)                              # (N, C, 2H, 2W)
    up_nhwc = jnp.transpose(up, (0, 2, 3, 1))

    # conv1: 2x2, valid
    kp1 = _round_up(4 * c, LANE)
    a1, (_, h1, w1) = im2col_bf16(up_nhwc, 2, 2, kp1)
    y1 = pallas_matmul_bias(a1, pack_weight(params['w1'], kp1, cp),
                            pack_vec(params['b1'], cp))
    y1 = y1[:n * h1 * w1, :ch].reshape(n, h1, w1, ch)

    # center-crop skip and concat on channels (stay NHWC)
    skip_nhwc = jnp.transpose(skip_nchw, (0, 2, 3, 1))
    cat = jnp.concatenate([y1, crop_nhwc(skip_nhwc, h1, w1)], axis=-1)

    # conv2: 3x3, pad=1 -> BN (batch stats) -> ReLU
    kp2 = _round_up(9 * c, LANE)
    cat_p = jnp.pad(cat, ((0, 0), (1, 1), (1, 1), (0, 0)))
    a2, (_, h2, w2) = im2col_bf16(cat_p, 3, 3, kp2)
    y2 = pallas_conv_bn_relu(a2, pack_weight(params['w2'], kp2, cp),
                             pack_vec(params['b2'], cp), gamma, beta,
                             m_real=n * h2 * w2, out_dtype=jnp.bfloat16)
    y2 = y2[:n * h2 * w2, :ch].reshape(n, h2, w2, ch)

    # conv3: 2x2, pad=1 -> BN (batch stats) -> ReLU
    kp3 = _round_up(4 * ch, LANE)
    y2_p = jnp.pad(y2, ((0, 0), (1, 1), (1, 1), (0, 0)))
    a3, (_, h3, w3) = im2col_bf16(y2_p, 2, 2, kp3)
    y3 = pallas_conv_bn_relu(a3, pack_weight(params['w3'], kp3, cp),
                             pack_vec(params['b3'], cp), gamma, beta,
                             m_real=n * h3 * w3, out_dtype=jnp.float32)
    y3 = y3[:n * h3 * w3, :ch].reshape(n, h3, w3, ch)

    return jnp.transpose(y3, (0, 3, 1, 2))                      # back to NCHW


def init_params(key, input_channels):
    c = input_channels
    ch = c // 2
    ks = jax.random.split(key, 6)

    def u(k, shape, fan_in):
        bound = 1.0 / np.sqrt(fan_in)
        return jax.random.uniform(k, shape, jnp.float32, -bound, bound)

    return {
        'w1': u(ks[0], (ch, c, 2, 2), c * 4),   'b1': u(ks[1], (1, ch), c * 4),
        'w2': u(ks[2], (ch, c, 3, 3), c * 9),   'b2': u(ks[3], (1, ch), c * 9),
        'w3': u(ks[4], (ch, ch, 2, 2), ch * 4), 'b3': u(ks[5], (1, ch), ch * 4),
        'gamma': jnp.ones((1, ch), jnp.float32),    # BatchNorm2d affine defaults
        'beta': jnp.zeros((1, ch), jnp.float32),
    }


# ------------------------------ pure-JAX reference (f32) ------------------------------

def reference_forward(x, skip, params):
    n, c, h, w = x.shape
    ah = bilinear_matrix(h, 2 * h)
    aw = bilinear_matrix(w, 2 * w)
    up = jnp.einsum('oh,nchw,vw->ncov', ah, x, aw)

    def conv(z, wgt, b, pad):
        out = jax.lax.conv_general_dilated(
            z, wgt, window_strides=(1, 1), padding=[(pad, pad), (pad, pad)],
            dimension_numbers=('NCHW', 'OIHW', 'NCHW'))
        return out + b.reshape(1, -1, 1, 1)

    def bn_relu(z, gamma, beta):
        mean = jnp.mean(z, axis=(0, 2, 3), keepdims=True)
        var = jnp.mean((z - mean) ** 2, axis=(0, 2, 3), keepdims=True)
        zn = (z - mean) * jax.lax.rsqrt(var + BN_EPS)
        zn = zn * gamma.reshape(1, -1, 1, 1) + beta.reshape(1, -1, 1, 1)
        return jnp.maximum(zn, 0.0)

    y1 = conv(up, params['w1'], params['b1'][0], 0)
    hs, ho = skip.shape[2], y1.shape[2]
    ws, wo = skip.shape[3], y1.shape[3]
    sk = skip[:, :, int((hs - ho) / 2):int((hs + ho) / 2),
              int((ws - wo) / 2):int((ws + wo) / 2)]
    cat = jnp.concatenate([y1, sk], axis=1)
    y2 = bn_relu(conv(cat, params['w2'], params['b2'][0], 1),
                 params['gamma'][0], params['beta'][0])
    y3 = bn_relu(conv(y2, params['w3'], params['b3'][0], 1),
                 params['gamma'][0], params['beta'][0])
    return y3


if __name__ == "__main__":
    key = jax.random.PRNGKey(0)
    k1, k2, k3 = jax.random.split(key, 3)

    n, c, h, w = 2, 4, 8, 8                    # x: (N, C, H, W)
    x = jax.random.normal(k1, (n, c, h, w), jnp.float32)
    skip = jax.random.normal(k2, (n, c // 2, 2 * h, 2 * w), jnp.float32)
    params = init_params(k3, c)

    out = jax.block_until_ready(expanding_block_forward(x, skip, params))
    assert out.shape == (n, c // 2, 2 * h, 2 * w), out.shape
    assert bool(jnp.all(jnp.isfinite(out)))

    ref = jax.block_until_ready(reference_forward(x, skip, params))
    max_err = float(jnp.max(jnp.abs(out - ref)))
    assert max_err < 0.25, f"max abs err vs reference: {max_err}"   # bf16 MXU tolerance

    print("KERNEL_OK")
</pallas_src>

<mosaic_0001>
module attributes {stable_mosaic.version = 11 : i64} {
  func.func @upsample2x_kernel(%arg0: i32, %arg1: i32, %arg2: memref<1x4x8x8xf32, #tpu.memory_space<vmem>>, %arg3: memref<8x16xf32, #tpu.memory_space<vmem>>, %arg4: memref<16x8xf32, #tpu.memory_space<vmem>>, %arg5: memref<1x4x16x16xf32, #tpu.memory_space<vmem>>) attributes {dimension_semantics = [#tpu.dimension_semantics<parallel>, #tpu.dimension_semantics<parallel>], iteration_bounds = array<i64: 2, 1>, scalar_prefetch = 0 : i64, scratch_operands = 0 : i64, tpu.core_type = #tpu.core_type<tc>, window_params = [{transform_indices = @transform_0, window_bounds = array<i64: 1, 4, 8, 8>}, {pipeline_mode = #tpu.pipeline_mode<synchronous>, transform_indices = @transform_1, window_bounds = array<i64: 8, 16>}, {pipeline_mode = #tpu.pipeline_mode<synchronous>, transform_indices = @transform_2, window_bounds = array<i64: 16, 8>}, {transform_indices = @transform_3, window_bounds = array<i64: 1, 4, 16, 16>}]} {
    %c0 = arith.constant 0 : index
    %c0_0 = arith.constant 0 : index
    %c0_1 = arith.constant 0 : index
    %c0_2 = arith.constant 0 : index
    %0 = vector.load %arg2[%c0, %c0_0, %c0_1, %c0_2] : memref<1x4x8x8xf32, #tpu.memory_space<vmem>>, vector<1x4x8x8xf32>
    %1 = vector.shape_cast %0 : vector<1x4x8x8xf32> to vector<4x8x8xf32>
    %2 = vector.shape_cast %1 : vector<4x8x8xf32> to vector<32x8xf32>
    %c0_3 = arith.constant 0 : index
    %c0_4 = arith.constant 0 : index
    %3 = vector.load %arg3[%c0_3, %c0_4] : memref<8x16xf32, #tpu.memory_space<vmem>>, vector<8x16xf32>
    %cst = arith.constant dense<0.000000e+00> : vector<32x16xf32>
    %4 = tpu.matmul %2, %3, %cst {dimension_numbers = #tpu.dot_dimension_numbers<[1], [0], [0], [1], [0, 0, 1, 1], [], []>} : vector<32x8xf32>, vector<8x16xf32>, vector<32x16xf32> -> vector<32x16xf32>
    %5 = vector.shape_cast %4 : vector<32x16xf32> to vector<4x8x16xf32>
    %c0_5 = arith.constant 0 : index
    %c0_6 = arith.constant 0 : index
    %6 = vector.load %arg4[%c0_5, %c0_6] : memref<16x8xf32, #tpu.memory_space<vmem>>, vector<16x8xf32>
    %7 = vector.shape_cast %6 : vector<16x8xf32> to vector<1x16x8xf32>
    %8 = vector.broadcast %7 : vector<1x16x8xf32> to vector<4x16x8xf32>
    "tpu.trace_start"() <{level = 10 : i32, message = "coh,chv->cov"}> : () -> ()
    %cst_7 = arith.constant dense<0.000000e+00> : vector<4x16x16xf32>
    %9 = tpu.matmul %8, %5, %cst_7 {dimension_numbers = #tpu.dot_dimension_numbers<[2], [1], [1], [2], [0, 0, 0, 1, 1, 2], [0], [0]>} : vector<4x16x8xf32>, vector<4x8x16xf32>, vector<4x16x16xf32> -> vector<4x16x16xf32>
    "tpu.trace_stop"() : () -> ()
    %c0_8 = arith.constant 0 : index
    %c0_9 = arith.constant 0 : index
    %c0_10 = arith.constant 0 : index
    %c0_11 = arith.constant 0 : index
    %10 = vector.load %arg5[%c0_8, %c0_9, %c0_10, %c0_11] : memref<1x4x16x16xf32, #tpu.memory_space<vmem>>, vector<1x4x16x16xf32>
    %11 = vector.shape_cast %10 : vector<1x4x16x16xf32> to vector<4x16x16xf32>
    %12 = vector.shape_cast %9 : vector<4x16x16xf32> to vector<1x4x16x16xf32>
    tpu.vector_store %arg5[%c0_8, %c0_9, %c0_10, %c0_11], %12 {strides = array<i32>} : memref<1x4x16x16xf32, #tpu.memory_space<vmem>>, vector<1x4x16x16xf32>,
    return
  }
  func.func @transform_0(%arg0: i32, %arg1: i32) -> (i32, i32, i32, i32) {
    %c0_i32 = arith.constant 0 : i32
    %c0_i32_0 = arith.constant 0 : i32
    %c0_i32_1 = arith.constant 0 : i32
    return %arg0, %arg1, %c0_i32, %c0_i32_0 : i32, i32, i32, i32
  }
  func.func @transform_1(%arg0: i32, %arg1: i32) -> (i32, i32) {
    %c0_i32 = arith.constant 0 : i32
    %c0_i32_0 = arith.constant 0 : i32
    %c0_i32_1 = arith.constant 0 : i32
    return %c0_i32, %c0_i32_0 : i32, i32
  }
  func.func @transform_2(%arg0: i32, %arg1: i32) -> (i32, i32) {
    %c0_i32 = arith.constant 0 : i32
    %c0_i32_0 = arith.constant 0 : i32
    %c0_i32_1 = arith.constant 0 : i32
    return %c0_i32, %c0_i32_0 : i32, i32
  }
  func.func @transform_3(%arg0: i32, %arg1: i32) -> (i32, i32, i32, i32) {
    %c0_i32 = arith.constant 0 : i32
    %c0_i32_0 = arith.constant 0 : i32
    %c0_i32_1 = arith.constant 0 : i32
    return %arg0, %arg1, %c0_i32, %c0_i32_0 : i32, i32, i32, i32
  }
}

</mosaic_0001>

<llo_original>
// kernel: tpu_custom_call.1
$region0: #{tpu_custom_call.1}
  #allocation0 [shape = 'u32[]', space=smem, size = 0x4, offset = 0x4, fixed_abs, tag = 'smem constant byte address 0x4 - core index']
  #allocation1 [shape = 'u32[72,128]{1,0:T(1,128)}', space=vmem, size = 0x9000, scoped, tag = 'internal scratch']
  %s0 = inlined_call_operand.hbm [shape: f32[2,4,8,8], index: 0, kind: input, shape index: {}]
  %s1 = inlined_call_operand.vmem [shape: f32[8,16], index: 1, kind: input, shape index: {}]
  %s2 = inlined_call_operand.vmem [shape: f32[16,8], index: 2, kind: input, shape index: {}]
  %s3 = inlined_call_operand.hbm [shape: f32[2,4,16,16], index: 3, kind: output, shape index: {}]
  %s4 = sld [smem:[#allocation0]]
  $region49: #{tpu_custom_call.1} parent=0
    _
  %s6 = ssub.s32 1, %s4
  %s7 = scalar_select 0, %s6, %s4
  $region1: #{tpu_custom_call.1} parent=0
    #allocation2 [shape = 'u8[32768]{0}', space=vmem, size = 0x8000, scoped, tag = 'input window, operand 0']
    #allocation3 [shape = 's32[2]{0}', space=sflag, size = 0x8, scoped, tag = 'scoped memory for tpu_custom_call.1']
    #allocation4 [shape = 's32[2]{0}', space=sflag, size = 0x8, scoped, tag = 'scoped memory for tpu_custom_call.1']
    #allocation5 [shape = 'u8[65536]{0}', space=vmem, size = 0x10000, scoped, tag = 'output window, operand 0']
    %8 = vsyncpa [#allocation3], 0
    %s9 = scalar_lea.sflag [#allocation3], 1
    %10 = vsyncpa %s9, 0
    %11 = vsyncpa [#allocation4], 0
    %s12 = scalar_lea.sflag [#allocation4], 1
    %13 = vsyncpa %s12, 0
    loop: start=0, step=1, limit=4
    $region2: #{tpu_custom_call.1} parent=1 // loop_pre_header
      _
    $region3: #{tpu_custom_call.1} parent=1 // loop_header
      %s15 = sphi 0, %s19
      %p16 = scmp.ge.s32.totalorder %s15, 4
      %s22 = sphi 0, %s34
      %s23 = sphi 0, %s30
      %s24 = sphi 0, %s22
      %s25 = sphi 0, %s23
      %s26 = sphi 0, %s24
      %s27 = sphi 0, %s25
      %s39 = sphi 0, %s41
      %s42 = sphi 0, %s39
      %s43 = sphi 0, %s42
      %s59 = sphi 0, %s43
      %s63 = sphi 0, %s63
      %s65 = sphi 0, %s63
      %s66 = sphi 0, %s65
      %s80 = sphi 0, %s66
      %s84 = sphi 0, %s84
      %s86 = sphi 0, %s84
      %s87 = sphi 0, %s86
      %s101 = sphi 0, %s87
      %s109 = sphi 0, %s111
      %s112 = sphi 0, %s109
      %s113 = sphi 0, %s112
      %s129 = sphi 0, %s113
    $region4: #{tpu_custom_call.1} parent=1 // loop_header_branch
      %18 = sbr.rel (%p16) target = $region8
    $region5: #{tpu_custom_call.1} parent=1 // loop_body
      %s20 = ssub.s32 %s15, 1
      %s21 = ssub.s32 %s15, 2
      %s28 = sadd.s32 1, %s23
      %p29 = scmp.ge.s32.totalorder %s28, 1
      %s30 = scalar_select %p29, 0, %s28
      %s31 = sadd.s32 1, %s22
      %s32 = scalar_select %p29, %s31, %s22
      %p33 = scmp.ge.s32.totalorder %s32, 2
      %s34 = scalar_select %p33, 0, %s32
      %s35 = ssub.s32 %s22, %s34
      %s36 = ssub.s32 %s23, %s30
      %s37 = sor.u32 %s35, %s36
      %p38 = scmp.eq.s32.totalorder %s37, 0
      %s40 = sadd.s32 %s39, 1
      %s41 = scalar_select %p38, %s39, %s40
      %p44 = pneg %p38
      %p45 = scmp.eq.s32.totalorder %s15, 1
      %p46 = por %p44, %p45
      %p47 = scmp.ne.s32.totalorder %s39, %s42
      %p48 = scmp.eq.s32.totalorder %s15, 0
      %p49 = por %p47, %p48
      %p50 = scmp.ne.s32.totalorder %s39, %s42
      %p51 = scmp.eq.s32.totalorder %s20, 1
      %p52 = por %p50, %p51
      %p53 = scmp.ne.s32.totalorder %s42, %s43
      %p54 = scmp.eq.s32.totalorder %s20, 0
      %p55 = por %p53, %p54
      %p56 = scmp.ne.s32.totalorder %s42, %s43
      %p57 = scmp.eq.s32.totalorder %s21, 1
      %p58 = por %p56, %p57
      %p60 = scmp.ne.s32.totalorder %s43, %s59
      %p61 = scmp.eq.s32.totalorder %s21, 0
      %p62 = por %p60, %p61
      %s64 = sadd.s32 %s63, 1
      %p67 = scmp.eq.s32.totalorder %s15, 1
      %p68 = scmp.ne.s32.totalorder %s63, %s65
      %p69 = scmp.eq.s32.totalorder %s15, 0
      %p70 = por %p68, %p69
      %p71 = scmp.ne.s32.totalorder %s63, %s65
      %p72 = scmp.eq.s32.totalorder %s20, 1
      %p73 = por %p71, %p72
      %p74 = scmp.ne.s32.totalorder %s65, %s66
      %p75 = scmp.eq.s32.totalorder %s20, 0
      %p76 = por %p74, %p75
      %p77 = scmp.ne.s32.totalorder %s65, %s66
      %p78 = scmp.eq.s32.totalorder %s21, 1
      %p79 = por %p77, %p78
      %p81 = scmp.ne.s32.totalorder %s66, %s80
      %p82 = scmp.eq.s32.totalorder %s21, 0
      %p83 = por %p81, %p82
      %s85 = sadd.s32 %s84, 1
      %p88 = scmp.eq.s32.totalorder %s15, 1
      %p89 = scmp.ne.s32.totalorder %s84, %s86
      %p90 = scmp.eq.s32.totalorder %s15, 0
      %p91 = por %p89, %p90
      %p92 = scmp.ne.s32.totalorder %s84, %s86
      %p93 = scmp.eq.s32.totalorder %s20, 1
      %p94 = por %p92, %p93
      %p95 = scmp.ne.s32.totalorder %s86, %s87
      %p96 = scmp.eq.s32.totalorder %s20, 0
      %p97 = por %p95, %p96
      %p98 = scmp.ne.s32.totalorder %s86, %s87
      %p99 = scmp.eq.s32.totalorder %s21, 1
      %p100 = por %p98, %p99
      %p102 = scmp.ne.s32.totalorder %s87, %s101
      %p103 = scmp.eq.s32.totalorder %s21, 0
      %p104 = por %p102, %p103
      %s105 = ssub.s32 %s22, %s34
      %s106 = ssub.s32 %s23, %s30
      %s107 = sor.u32 %s105, %s106
      %p108 = scmp.eq.s32.totalorder %s107, 0
      %s110 = sadd.s32 %s109, 1
      %s111 = scalar_select %p108, %s109, %s110
      %p114 = pneg %p108
      %p115 = scmp.eq.s32.totalorder %s15, 1
      %p116 = por %p114, %p115
      %p117 = scmp.ne.s32.totalorder %s109, %s112
      %p118 = scmp.eq.s32.totalorder %s15, 0
      %p119 = por %p117, %p118
      %p120 = scmp.ne.s32.totalorder %s109, %s112
      %p121 = scmp.eq.s32.totalorder %s20, 1
      %p122 = por %p120, %p121
      %p123 = scmp.ne.s32.totalorder %s112, %s113
      %p124 = scmp.eq.s32.totalorder %s20, 0
      %p125 = por %p123, %p124
      %p126 = scmp.ne.s32.totalorder %s112, %s113
      %p127 = scmp.eq.s32.totalorder %s21, 1
      %p128 = por %p126, %p127
      %p130 = scmp.ne.s32.totalorder %s113, %s129
      %p131 = scmp.eq.s32.totalorder %s21, 0
      %p132 = por %p130, %p131
      %p133 = scmp.le.s32.totalorder 1, %s15
      %p134 = scmp.lt.s32.totalorder %s15, 3
      %p135 = pnand %p133, %p134
      %p136 = pneg %p135
      // Predicated region
      $region9: #{tpu_custom_call.1} parent=5 // pred_check
        _
      $region10: #{tpu_custom_call.1} parent=5 // pred_check_branch
        %138 = sbr.rel (%p135) target = $region12
      $region11: #{tpu_custom_call.1} parent=5 // pred_region
        %s139 = ssub.s32 %s15, 1
        // Predicated region
        $region13: #{tpu_custom_call.1} parent=11 // pred_check
          %p140 = pneg %p76
        $region14: #{tpu_custom_call.1} parent=11 // pred_check_branch
          %142 = sbr.rel (%p140) target = $region16
        $region15: #{tpu_custom_call.1} parent=11 // pred_region
          _
        $region16: #{tpu_custom_call.1} parent=11 // pred_fallthru
          _
        // Predicated region
        $region17: #{tpu_custom_call.1} parent=11 // pred_check
          %p143 = pneg %p97
        $region18: #{tpu_custom_call.1} parent=11 // pred_check_branch
          %145 = sbr.rel (%p143) target = $region20
        $region19: #{tpu_custom_call.1} parent=11 // pred_region
          _
        $region20: #{tpu_custom_call.1} parent=11 // pred_fallthru
          _
      $region12: #{tpu_custom_call.1} parent=5 // pred_fallthru
        _
      %p146 = scmp.lt.s32.totalorder %s15, 2
      // Predicated region
      $region21: #{tpu_custom_call.1} parent=5 // pred_check
        %p147 = pneg %p146
      $region22: #{tpu_custom_call.1} parent=5 // pred_check_branch
        %149 = sbr.rel (%p147) target = $region24
      $region23: #{tpu_custom_call.1} parent=5 // pred_region
        // Predicated region
        $region25: #{tpu_custom_call.1} parent=23 // pred_check
          %p150 = pneg %p49
        $region26: #{tpu_custom_call.1} parent=23 // pred_check_branch
          %152 = sbr.rel (%p150) target = $region28
        $region27: #{tpu_custom_call.1} parent=23 // pred_region
          %s153 = sand.u32 %s39, 1
          %s154 = scalar_lea.sflag [#allocation3], %s153
          %s155 = sand.u32 %s39, 1
          %s156 = smul.addr %s155, 32
          %s157 = scalar_lea.vmem [#allocation2], %s156
          %s158 = smul.u32 4, %s23
          %160 = vsyncadd %s154, 0
          %s161 = smul.addr %s22, 4
          %s162 = sadd.s32 %s158, %s161
          %s163 = smul.addr %s162, 8
          %s164 = scalar_lea.hbm %s0, %s163
          %s165 = sshll.u32 %s164, 4
          %s166 = int_to_ptr.hbm [resolvable:$true] %s165
          %s167 = sshll.u32 %s157, 4
          %s168 = int_to_ptr.vmem [resolvable:$true] %s167
          %173 = dma.hbm_to_vmem [thread:$0]  %s166, 512, %s168, %s154, 128, 128, 8
        $region28: #{tpu_custom_call.1} parent=23 // pred_fallthru
          _
      $region24: #{tpu_custom_call.1} parent=5 // pred_fallthru
        _
      %p174 = scmp.le.s32.totalorder 1, %s15
      %p175 = scmp.lt.s32.totalorder %s15, 3
      %p176 = pnand %p174, %p175
      %p177 = pneg %p176
      // Predicated region
      $region29: #{tpu_custom_call.1} parent=5 // pred_check
        _
      $region30: #{tpu_custom_call.1} parent=5 // pred_check_branch
        %179 = sbr.rel (%p176) target = $region32
      $region31: #{tpu_custom_call.1} parent=5 // pred_region
        %s180 = ssub.s32 %s15, 1
        %s181 = sand.u32 %s42, 1
        %s182 = scalar_lea.sflag [#allocation3], %s181
        %s183 = sand.u32 %s42, 1
        %s184 = smul.addr %s183, 32
        %s185 = scalar_lea.vmem [#allocation2], %s184
        // Predicated region
        $region33: #{tpu_custom_call.1} parent=31 // pred_check
          %p186 = pneg %p55
        $region34: #{tpu_custom_call.1} parent=31 // pred_check_branch
          %188 = sbr.rel (%p186) target = $region36
        $region35: #{tpu_custom_call.1} parent=31 // pred_region
          %190 = dma.done %s182, 512
        $region36: #{tpu_custom_call.1} parent=31 // pred_fallthru
          _
        %s191 = sand.u32 %s42, 1
        %s192 = scalar_lea.sflag [#allocation3], %s191
        %s193 = sand.u32 %s42, 1
        %s194 = smul.addr %s193, 32
        %s195 = scalar_lea.vmem [#allocation2], %s194
        %p196 = pneg %p55
        %p197 = pneg %p52
        %p198 = pneg %p76
        %p199 = pneg %p73
        %p200 = pneg %p97
        %p201 = pneg %p94
        %p202 = pneg %p125
        %p203 = pneg %p122
        %s204 = sand.u32 %s112, 1
        %s205 = scalar_lea.sflag [#allocation4], %s204
        %s206 = sand.u32 %s112, 1
        %s207 = smul.addr %s206, 64
        %s208 = scalar_lea.vmem [#allocation5], %s207
        %s209 = smul.u32 4, %s25
        %s210 = smul.u32 4, %s25
        %v211 = vld [vmem:[%s185] sm:$0xff]
        %v212 = vld [vmem:[%s185 + $0x8] sm:$0xff]
        %v213 = vld [vmem:[%s185 + $0x10] sm:$0xff]
        %v214 = vld [vmem:[%s185 + $0x18] sm:$0xff]
        %v215 = vld [vmem:[%s1] sm:$0xff]
        %vm216 = vcmask 64512
        %v218 = vsel %vm216, %v211, 0
        %v221 = vsel %vm216, %v212, 0
        %v224 = vsel %vm216, %v213, 0
        %v227 = vsel %vm216, %v214, 0
        %229 = vmatpush.msra.mxu0 0.0
        %230 = vmatpush.msra.mxu0 0.0
        %231 = vmatpush.msra.mxu0 0.0
        %232 = vmatpush.msra.mxu0 0.0
        %233 = vmatpush.msra.mxu0 0.0
        %234 = vmatpush.msra.mxu0 0.0
        %235 = vmatpush.msra.mxu0 0.0
        %236 = vmatpush.msra.mxu0 0.0
        %237 = vmatpush.msra.mxu0 0.0
        %238 = vmatpush.msra.mxu0 0.0
        %239 = vmatpush.msra.mxu0 0.0
        %240 = vmatpush.msra.mxu0 0.0
        %241 = vmatpush.msra.mxu0 0.0
        %242 = vmatpush.msra.mxu0 0.0
        %243 = vmatpush.msra.mxu0 0.0
        %244 = vmatpush.msra.mxu0 %v215
        %245 = vmatmul.f32.gmra.mxu0 %v218
        %v246 = vpop.f32.mrf.mxu0
        %v247 = vadd.f32 0.0, %v246
        %248 = vmatmul.f32.gmra.mxu0 %v221
        %v249 = vpop.f32.mrf.mxu0
        %v250 = vadd.f32 0.0, %v249
        %251 = vmatmul.f32.gmra.mxu0 %v224
        %v252 = vpop.f32.mrf.mxu0
        %v253 = vadd.f32 0.0, %v252
        %254 = vmatmul.f32.gmra.mxu0 %v227
        %v255 = vpop.f32.mrf.mxu0
        %v256 = vadd.f32 0.0, %v255
        %257 = vdwg.mxu0
        %v258 = vld [vmem:[%s2] sm:$0xff]
        %v259 = vld [vmem:[%s2 + $0x8] sm:$0xff]
        %v261 = vsel %vm216, %v258, 0
        %v264 = vsel %vm216, %v259, 0
        %266 = vmatpush.msra.mxu0 0.0
        %267 = vmatpush.msra.mxu0 0.0
        %268 = vmatpush.msra.mxu0 0.0
        %269 = vmatpush.msra.mxu0 0.0
        %270 = vmatpush.msra.mxu0 0.0
        %271 = vmatpush.msra.mxu0 0.0
        %272 = vmatpush.msra.mxu0 0.0
        %273 = vmatpush.msra.mxu0 0.0
        %274 = vmatpush.msra.mxu0 0.0
        %275 = vmatpush.msra.mxu0 0.0
        %276 = vmatpush.msra.mxu0 0.0
        %277 = vmatpush.msra.mxu0 0.0
        %278 = vmatpush.msra.mxu0 0.0
        %279 = vmatpush.msra.mxu0 0.0
        %280 = vmatpush.msra.mxu0 0.0
        %281 = vmatpush.msra.mxu0 %v247
        %282 = vmatmul.f32.gmra.mxu0 %v261
        %v283 = vpop.f32.mrf.mxu0
        %v284 = vadd.f32 0.0, %v283
        %285 = vmatmul.f32.gmra.mxu0 %v264
        %v286 = vpop.f32.mrf.mxu0
        %v287 = vadd.f32 0.0, %v286
        %288 = vdwg.mxu0
        %289 = vmatpush.msra.mxu0 0.0
        %290 = vmatpush.msra.mxu0 0.0
        %291 = vmatpush.msra.mxu0 0.0
        %292 = vmatpush.msra.mxu0 0.0
        %293 = vmatpush.msra.mxu0 0.0
        %294 = vmatpush.msra.mxu0 0.0
        %295 = vmatpush.msra.mxu0 0.0
        %296 = vmatpush.msra.mxu0 0.0
        %297 = vmatpush.msra.mxu0 0.0
        %298 = vmatpush.msra.mxu0 0.0
        %299 = vmatpush.msra.mxu0 0.0
        %300 = vmatpush.msra.mxu0 0.0
        %301 = vmatpush.msra.mxu0 0.0
        %302 = vmatpush.msra.mxu0 0.0
        %303 = vmatpush.msra.mxu0 0.0
        %304 = vmatpush.msra.mxu0 %v250
        %305 = vmatmul.f32.gmra.mxu0 %v261
        %v306 = vpop.f32.mrf.mxu0
        %v307 = vadd.f32 0.0, %v306
        %308 = vmatmul.f32.gmra.mxu0 %v264
        %v309 = vpop.f32.mrf.mxu0
        %v310 = vadd.f32 0.0, %v309
        %311 = vdwg.mxu0
        %312 = vmatpush.msra.mxu0 0.0
        %313 = vmatpush.msra.mxu0 0.0
        %314 = vmatpush.msra.mxu0 0.0
        %315 = vmatpush.msra.mxu0 0.0
        %316 = vmatpush.msra.mxu0 0.0
        %317 = vmatpush.msra.mxu0 0.0
        %318 = vmatpush.msra.mxu0 0.0
        %319 = vmatpush.msra.mxu0 0.0
        %320 = vmatpush.msra.mxu0 0.0
        %321 = vmatpush.msra.mxu0 0.0
        %322 = vmatpush.msra.mxu0 0.0
        %323 = vmatpush.msra.mxu0 0.0
        %324 = vmatpush.msra.mxu0 0.0
        %325 = vmatpush.msra.mxu0 0.0
        %326 = vmatpush.msra.mxu0 0.0
        %327 = vmatpush.msra.mxu0 %v253
        %328 = vmatmul.f32.gmra.mxu0 %v261
        %v329 = vpop.f32.mrf.mxu0
        %v330 = vadd.f32 0.0, %v329
        %331 = vmatmul.f32.gmra.mxu0 %v264
        %v332 = vpop.f32.mrf.mxu0
        %v333 = vadd.f32 0.0, %v332
        %334 = vdwg.mxu0
        %335 = vmatpush.msra.mxu0 0.0
        %336 = vmatpush.msra.mxu0 0.0
        %337 = vmatpush.msra.mxu0 0.0
        %338 = vmatpush.msra.mxu0 0.0
        %339 = vmatpush.msra.mxu0 0.0
        %340 = vmatpush.msra.mxu0 0.0
        %341 = vmatpush.msra.mxu0 0.0
        %342 = vmatpush.msra.mxu0 0.0
        %343 = vmatpush.msra.mxu0 0.0
        %344 = vmatpush.msra.mxu0 0.0
        %345 = vmatpush.msra.mxu0 0.0
        %346 = vmatpush.msra.mxu0 0.0
        %347 = vmatpush.msra.mxu0 0.0
        %348 = vmatpush.msra.mxu0 0.0
        %349 = vmatpush.msra.mxu0 0.0
        %350 = vmatpush.msra.mxu0 %v256
        %351 = vmatmul.f32.gmra.mxu0 %v261
        %v352 = vpop.f32.mrf.mxu0
        %v353 = vadd.f32 0.0, %v352
        %354 = vmatmul.f32.gmra.mxu0 %v264
        %v355 = vpop.f32.mrf.mxu0
        %v356 = vadd.f32 0.0, %v355
        %357 = vdwg.mxu0
        %vm358 = vcmask 130048
        %359 = vst.msk [vmem:[%s208] sm:$0xff] %vm358, %v284
        %360 = vst.msk [vmem:[%s208 + $0x8] sm:$0xff] %vm358, %v287
        %361 = vst.msk [vmem:[%s208 + $0x10] sm:$0xff] %vm358, %v307
        %362 = vst.msk [vmem:[%s208 + $0x18] sm:$0xff] %vm358, %v310
        %363 = vst.msk [vmem:[%s208 + $0x20] sm:$0xff] %vm358, %v330
        %364 = vst.msk [vmem:[%s208 + $0x28] sm:$0xff] %vm358, %v333
        %365 = vst.msk [vmem:[%s208 + $0x30] sm:$0xff] %vm358, %v353
        %366 = vst.msk [vmem:[%s208 + $0x38] sm:$0xff] %vm358, %v356
        %s367 = sand.u32 %s112, 1
        %s368 = scalar_lea.sflag [#allocation4], %s367
        %s369 = sand.u32 %s112, 1
        %s370 = smul.addr %s369, 64
        %s371 = scalar_lea.vmem [#allocation5], %s370
        // Predicated region
        $region37: #{tpu_custom_call.1} parent=31 // pred_check
          %p372 = pneg %p122
        $region38: #{tpu_custom_call.1} parent=31 // pred_check_branch
          %374 = sbr.rel (%p372) target = $region40
        $region39: #{tpu_custom_call.1} parent=31 // pred_region
          %s375 = smul.u32 4, %s25
          %377 = vsyncadd %s368, 0
          %s378 = smul.addr %s375, 2
          %s379 = smul.addr %s24, 8
          %s380 = sadd.s32 %s378, %s379
          %s381 = smul.addr %s380, 8
          %s382 = scalar_lea.hbm %s3, %s381
          %s383 = sshll.u32 %s371, 4
          %s384 = int_to_ptr.vmem [resolvable:$true] %s383
          %s385 = sshll.u32 %s382, 4
          %s386 = int_to_ptr.hbm [resolvable:$true] %s385
          %391 = dma.vmem_to_hbm [thread:$0]  %s384, 1024, %s386, %s368, 128, 128, 8
        $region40: #{tpu_custom_call.1} parent=31 // pred_fallthru
          _
      $region32: #{tpu_custom_call.1} parent=5 // pred_fallthru
        _
      %p392 = scmp.le.s32.totalorder 2, %s15
      // Predicated region
      $region41: #{tpu_custom_call.1} parent=5 // pred_check
        %p393 = pneg %p392
      $region42: #{tpu_custom_call.1} parent=5 // pred_check_branch
        %395 = sbr.rel (%p393) target = $region44
      $region43: #{tpu_custom_call.1} parent=5 // pred_region
        %s396 = ssub.s32 %s15, 2
        // Predicated region
        $region45: #{tpu_custom_call.1} parent=43 // pred_check
          %p397 = pneg %p128
        $region46: #{tpu_custom_call.1} parent=43 // pred_check_branch
          %399 = sbr.rel (%p397) target = $region48
        $region47: #{tpu_custom_call.1} parent=43 // pred_region
          %s400 = sand.u32 %s113, 1
          %s401 = scalar_lea.sflag [#allocation4], %s400
          %s402 = sand.u32 %s113, 1
          %s403 = smul.addr %s402, 64
          %s404 = scalar_lea.vmem [#allocation5], %s403
          %406 = dma.done %s401, 1024
        $region48: #{tpu_custom_call.1} parent=43 // pred_fallthru
          _
      $region44: #{tpu_custom_call.1} parent=5 // pred_fallthru
        _
    $region6: #{tpu_custom_call.1} parent=1 // loop_footer
      %s19 = sadd.s32 1, %s15
    $region7: #{tpu_custom_call.1} parent=1 // loop_footer_branch
      %14 = sbr.rel target = $region3
    $region8: #{tpu_custom_call.1} parent=1 // loop_exit
      _
    %407 = vsyncpa [#allocation3], 1
    %s408 = scalar_lea.sflag [#allocation3], 1
    %409 = vsyncpa %s408, 1
    %410 = vsyncpa [#allocation4], 1
    %s411 = scalar_lea.sflag [#allocation4], 1
    %412 = vsyncpa %s411, 1

</llo_original>
